<compile_context>
chip_gen: v7x
topology: tpu7x:2x2x1
jax: 0.10.0
libtpu: 0.0.40
codegen_flags: <defaults>
</compile_context>

<pallas_src>
import jax
import jax.numpy as jnp
from jax.experimental import pallas as pl
from jax.experimental.pallas import tpu as pltpu

_LANES = 128
_TARGET_BLOCK_BYTES = 8 * 1024 * 1024    # ~8 MiB per block
_VMEM_LIMIT_BYTES = 40 * 1024 * 1024     # 2 x double-buffered 8 MiB + headroom;
                                         # > v5e's 16 MiB default, < v7x's 64 MiB physical
_MIN_GRID_STEPS = 4                      # force >=4 steps for big inputs (pipelining + 2 TCs)
_MULTI_STEP_MIN_BYTES = 512 * 1024       # below this, single-block overhead is noise


def _mish_kernel(x_ref, o_ref):
    x = x_ref[...]
    # bf16 I/O computes in bf16 (keeps the kernel HBM-bound on v6e/v7x where
    # f32 math over bf16 I/O would become EUP/VALU-bound).  Everything else
    # computes in f32 (only safe path on v5e: no bf16 VPU/EUP there).
    cdt = jnp.bfloat16 if x.dtype == jnp.bfloat16 else jnp.float32
    xf = x.astype(cdt)
    # Single-exp rational form of tanh(softplus(x)).
    n = jnp.exp(jnp.minimum(xf, 20.0))        # EUP exp; clamp avoids inf*inf -> NaN
    t = n * (n + 2.0)
    den = (t + 2.0).astype(jnp.float32)       # reciprocal path stays f32
    r = pl.reciprocal(den, approx=True)       # EUP vrcp
    r = r * (2.0 - den * r)                   # one Newton step on the VPU -> ~24-bit
    o_ref[...] = (xf * t * r.astype(cdt)).astype(o_ref.dtype)


def _mish_rows(x2d):
    """Run the kernel over a lane-dense (rows, 128) slab."""
    rows, lanes = x2d.shape
    dtype = x2d.dtype
    itemsize = jnp.dtype(dtype).itemsize
    # Sublane packing multiple for the row dim: 8 (f32) / 16 (bf16) / 32 (int8).
    sub = 8 * max(1, 4 // itemsize)
    total_bytes = rows * lanes * itemsize

    max_tile_rows = max(sub, (_TARGET_BLOCK_BYTES // (lanes * itemsize)) // sub * sub)
    if total_bytes <= _MULTI_STEP_MIN_BYTES or rows <= sub:
        # Tiny input: one block (block == full array dims is always legal).
        tile_rows = rows
    else:
        # Cap the tile so we get >= _MIN_GRID_STEPS grid steps: DMA/compute
        # overlap + both v7x TensorCores get work.  Ragged last block is
        # (sub,128)-aligned and masked by Pallas.
        want = pl.cdiv(pl.cdiv(rows, _MIN_GRID_STEPS), sub) * sub
        tile_rows = min(max_tile_rows, max(sub, want))
    grid = (pl.cdiv(rows, tile_rows),)

    cost = pl.CostEstimate(
        flops=8 * rows * lanes,
        transcendentals=2 * rows * lanes,
        bytes_accessed=2 * rows * lanes * itemsize,
    )

    return pl.pallas_call(
        _mish_kernel,
        out_shape=jax.ShapeDtypeStruct((rows, lanes), dtype),
        grid=grid,
        in_specs=[pl.BlockSpec((tile_rows, lanes), lambda i: (i, 0))],
        out_specs=pl.BlockSpec((tile_rows, lanes), lambda i: (i, 0)),
        compiler_params=pltpu.CompilerParams(
            dimension_semantics=("parallel",),
            vmem_limit_bytes=_VMEM_LIMIT_BYTES,
        ),
        cost_estimate=cost,
    )(x2d)


def mish(x):
    """Elementwise Mish on a float array of any shape/dtype."""
    orig_shape = x.shape
    dtype = x.dtype

    flat = x.reshape(-1)
    n = flat.shape[0]
    if n == 0:
        return x

    rem = n % _LANES
    main = n - rem

    pieces = []
    if main:
        rows = main // _LANES
        x2d = (flat if rem == 0 else flat[:main]).reshape(rows, _LANES)
        pieces.append(_mish_rows(x2d).reshape(-1))
    if rem:
        # <128-element ragged tail: trivial XLA expression instead of padding /
        # slicing a full copy of the array through HBM.
        tail = flat[main:].astype(jnp.float32)
        pieces.append((tail * jnp.tanh(jax.nn.softplus(tail))).astype(dtype))

    out_flat = pieces[0] if len(pieces) == 1 else jnp.concatenate(pieces)
    return out_flat.reshape(orig_shape)


def _mish_ref(x):
    xf = x.astype(jnp.float32)
    return (xf * jnp.tanh(jax.nn.softplus(xf))).astype(x.dtype)


if __name__ == "__main__":
    key = jax.random.PRNGKey(0)
    x = jax.random.normal(key, (2, 4, 16, 16), dtype=jnp.float32) * 3.0

    y = mish(x)
    y = jax.block_until_ready(y)

    y_ref = _mish_ref(x)
    assert y.shape == x.shape and y.dtype == x.dtype
    assert jnp.allclose(y, y_ref, atol=1e-5, rtol=1e-5)

    # Also exercise a ragged (numel % 128 != 0) shape to cover the tail path.
    x2 = jax.random.normal(jax.random.PRNGKey(1), (3, 5, 7), dtype=jnp.float32) * 3.0
    y2 = jax.block_until_ready(mish(x2))
    assert jnp.allclose(y2, _mish_ref(x2), atol=1e-5, rtol=1e-5)

    print("KERNEL_OK")
</pallas_src>

<mosaic_0001>
module attributes {stable_mosaic.version = 11 : i64} {
  func.func @_mish_kernel(%arg0: i32, %arg1: memref<16x128xf32, #tpu.memory_space<vmem>>, %arg2: memref<16x128xf32, #tpu.memory_space<vmem>>) attributes {dimension_semantics = [#tpu.dimension_semantics<parallel>], iteration_bounds = array<i64: 1>, scalar_prefetch = 0 : i64, scratch_operands = 0 : i64, tpu.core_type = #tpu.core_type<tc>, window_params = [{transform_indices = @transform_0, window_bounds = array<i64: 16, 128>}, {transform_indices = @transform_1, window_bounds = array<i64: 16, 128>}]} {
    %c0 = arith.constant 0 : index
    %c0_0 = arith.constant 0 : index
    %0 = vector.load %arg1[%c0, %c0_0] : memref<16x128xf32, #tpu.memory_space<vmem>>, vector<16x128xf32>
    %cst = arith.constant 2.000000e+01 : f32
    %1 = vector.broadcast %cst : f32 to vector<16x128xf32>
    %2 = arith.minimumf %0, %1 : vector<16x128xf32>
    %3 = math.exp %2 : vector<16x128xf32>
    %cst_1 = arith.constant 2.000000e+00 : f32
    %4 = vector.broadcast %cst_1 : f32 to vector<16x128xf32>
    %5 = arith.addf %3, %4 : vector<16x128xf32>
    %6 = arith.mulf %3, %5 : vector<16x128xf32>
    %cst_2 = arith.constant 2.000000e+00 : f32
    %7 = vector.broadcast %cst_2 : f32 to vector<16x128xf32>
    %8 = arith.addf %6, %7 : vector<16x128xf32>
    %9 = tpu.reciprocal %8 {approx = true} : vector<16x128xf32> -> vector<16x128xf32>
    %10 = arith.mulf %8, %9 : vector<16x128xf32>
    %cst_3 = arith.constant 2.000000e+00 : f32
    %11 = vector.broadcast %cst_3 : f32 to vector<16x128xf32>
    %12 = arith.subf %11, %10 : vector<16x128xf32>
    %13 = arith.mulf %9, %12 : vector<16x128xf32>
    %14 = arith.mulf %0, %6 : vector<16x128xf32>
    %15 = arith.mulf %14, %13 : vector<16x128xf32>
    %c0_4 = arith.constant 0 : index
    %c0_5 = arith.constant 0 : index
    %16 = vector.load %arg2[%c0_4, %c0_5] : memref<16x128xf32, #tpu.memory_space<vmem>>, vector<16x128xf32>
    tpu.vector_store %arg2[%c0_4, %c0_5], %15 {strides = array<i32>} : memref<16x128xf32, #tpu.memory_space<vmem>>, vector<16x128xf32>,
    return
  }
  func.func @transform_0(%arg0: i32) -> (i32, i32) {
    %c0_i32 = arith.constant 0 : i32
    %c0_i32_0 = arith.constant 0 : i32
    return %arg0, %c0_i32 : i32, i32
  }
  func.func @transform_1(%arg0: i32) -> (i32, i32) {
    %c0_i32 = arith.constant 0 : i32
    %c0_i32_0 = arith.constant 0 : i32
    return %arg0, %c0_i32 : i32, i32
  }
}

</mosaic_0001>

<llo_original>
// kernel: tpu_custom_call.1
$region0: #{tpu_custom_call.1}
  #allocation0 [shape = 'u32[]', space=smem, size = 0x4, offset = 0x4, fixed_abs, tag = 'smem constant byte address 0x4 - core index']
  #allocation1 [shape = 'u32[144,128]{1,0:T(1,128)}', space=vmem, size = 0x12000, scoped, tag = 'internal scratch']
  %s0 = inlined_call_operand.hbm [shape: f32[16,128], index: 0, kind: input, shape index: {}]
  %s1 = inlined_call_operand.hbm [shape: f32[16,128], index: 1, kind: output, shape index: {}]
  %s2 = sld [smem:[#allocation0]]
  $region18: #{tpu_custom_call.1} parent=0
    _
  %s4 = ssub.s32 1, %s2
  %s5 = scalar_select 0, %s4, %s2
  $region1: #{tpu_custom_call.1} parent=0
    #allocation2 [shape = 'u8[8192]{0}', space=vmem, size = 0x2000, scoped, tag = 'input window, operand 0, single buffered']
    #allocation3 [shape = 's32[1]{0}', space=sflag, size = 0x4, scoped, tag = 'scoped memory for tpu_custom_call.1']
    #allocation4 [shape = 's32[1]{0}', space=sflag, size = 0x4, scoped, tag = 'scoped memory for tpu_custom_call.1']
    #allocation5 [shape = 'u8[8192]{0}', space=vmem, size = 0x2000, scoped, tag = 'output window, operand 0, single buffered']
    %6 = vsyncpa [#allocation3], 0
    %7 = vsyncpa [#allocation4], 0
    // Predicated region
    $region2: #{tpu_custom_call.1} parent=1 // pred_check
      _
    $region3: #{tpu_custom_call.1} parent=1 // pred_check_branch
      %9 = sbr.rel (0) target = $region5
    $region4: #{tpu_custom_call.1} parent=1 // pred_region
      %s11 = ssub.s32 256, 256
      %12 = vsyncadd [#allocation3], %s11
      %s13 = sshll.u32 [#allocation2], 4
      %s14 = int_to_ptr.vmem [resolvable:$true] %s13
      %19 = dma.hbm_to_vmem [thread:$0]  %s0, 256, %s14, [#allocation3], 128, 128, 8
    $region5: #{tpu_custom_call.1} parent=1 // pred_fallthru
      _
    // Predicated region
    $region6: #{tpu_custom_call.1} parent=1 // pred_check
      _
    $region7: #{tpu_custom_call.1} parent=1 // pred_check_branch
      %21 = sbr.rel (0) target = $region9
    $region8: #{tpu_custom_call.1} parent=1 // pred_region
      %22 = dma.done [#allocation3], 256
    $region9: #{tpu_custom_call.1} parent=1 // pred_fallthru
      _
    %v23 = vld [vmem:[#allocation2] sm:$0xff]
    %v24 = vld [vmem:[#allocation2 + $0x8] sm:$0xff]
    %v25 = vmin.f32 %v23, 20.0
    %v26 = vmin.f32 %v24, 20.0
    %v27 = vmul.f32 %v25, 1.442695
    %v28 = vpow.pop %v27
    %v29 = vmul.f32 %v26, 1.442695
    %v30 = vpow.pop %v29
    %v31 = vadd.f32 %v28, 2.0
    %v32 = vadd.f32 %v30, 2.0
    %v33 = vmul.f32 %v28, %v31
    %v34 = vmul.f32 %v30, %v32
    %v35 = vadd.f32 %v33, 2.0
    %v36 = vadd.f32 %v34, 2.0
    %v37 = vrcp.pop %v35
    %v38 = vrcp.pop %v36
    %v39 = vmul.f32 %v35, %v37
    %v40 = vmul.f32 %v36, %v38
    %v41 = vsub.f32 2.0, %v39
    %v42 = vsub.f32 2.0, %v40
    %v43 = vmul.f32 %v37, %v41
    %v44 = vmul.f32 %v38, %v42
    %v45 = vmul.f32 %v23, %v33
    %v46 = vmul.f32 %v24, %v34
    %v47 = vmul.f32 %v45, %v43
    %v48 = vmul.f32 %v46, %v44
    %49 = vst [vmem:[#allocation5] sm:$0xff] %v47
    %50 = vst [vmem:[#allocation5 + $0x8] sm:$0xff] %v48
    // Predicated region
    $region10: #{tpu_custom_call.1} parent=1 // pred_check
      _
    $region11: #{tpu_custom_call.1} parent=1 // pred_check_branch
      %52 = sbr.rel (0) target = $region13
    $region12: #{tpu_custom_call.1} parent=1 // pred_region
      %s54 = ssub.s32 256, 256
      %55 = vsyncadd [#allocation4], %s54
      %s56 = sshll.u32 [#allocation5], 4
      %s57 = int_to_ptr.vmem [resolvable:$true] %s56
      %62 = dma.vmem_to_hbm [thread:$0]  %s57, 256, %s1, [#allocation4], 128, 128, 8
    $region13: #{tpu_custom_call.1} parent=1 // pred_fallthru
      _
    // Predicated region
    $region14: #{tpu_custom_call.1} parent=1 // pred_check
      _
    $region15: #{tpu_custom_call.1} parent=1 // pred_check_branch
      %64 = sbr.rel (0) target = $region17
    $region16: #{tpu_custom_call.1} parent=1 // pred_region
      %65 = dma.done [#allocation4], 256
    $region17: #{tpu_custom_call.1} parent=1 // pred_fallthru
      _
    %66 = vsyncpa [#allocation3], 1
    %67 = vsyncpa [#allocation4], 1

</llo_original>
